<compile_context>
chip_gen: v6e
topology: v6e:2x2x1
jax: 0.10.0
libtpu: 0.0.40
codegen_flags: <defaults>
</compile_context>

<pallas_src>
import math

import jax
import jax.numpy as jnp
from jax.experimental import pallas as pl
from jax.experimental.pallas import tpu as pltpu


def _round_up(n, m):
    return ((n + m - 1) // m) * m


# ---------------------------------------------------------------------------
# Kernel: one row-tile of tokens -> embedded row-tile.
#   x_ref : (rows, c_in)   current token tile
#   w_ref : (c_in, dp)     resident weight (columns lane-padded to 128)
#   b_ref : (1, dp)        resident bias
#   o_ref : (rows, dp)     output tile (lane-dense, full padded width)
# ---------------------------------------------------------------------------
def _embed_kernel(x_ref, w_ref, b_ref, o_ref):
    y = jnp.dot(x_ref[...], w_ref[...], preferred_element_type=jnp.float32)
    y = y + b_ref[...]
    # Dropout is identity in eval mode.
    o_ref[...] = y.astype(o_ref.dtype)


# ---------------------------------------------------------------------------
# Wrapper.
# ---------------------------------------------------------------------------
def data_embedding(x, weight, bias, *, block_rows_max=4096,
                   vmem_tile_budget_bytes=12 * 1024 * 1024,
                   min_pallas_elements=1 << 20):
    """Pallas equivalent of DataEmbedding.forward (eval mode).

    x:      (..., c_in)
    weight: (c_in, d_model)   (i.e. PyTorch linear.weight.T)
    bias:   (d_model,)
    returns (..., d_model)
    """
    # TODO(synk): training-mode Dropout (stochastic masking) is not implemented;
    # eval-mode forward (identity dropout) is what this computes.
    *lead, c_in = x.shape
    d_model = weight.shape[1]
    assert weight.shape[0] == c_in
    T = int(math.prod(lead)) if lead else 1

    # Small-problem fast path: XLA's fused GEMM is optimal and avoids Pallas
    # launch / DMA-setup overhead for microscopic inputs.
    if T * d_model < min_pallas_elements:
        y = x.reshape(T, c_in) @ weight + bias
        return y.reshape(*lead, d_model) if lead else y.reshape(d_model)

    return _data_embedding_pallas(x, weight, bias, block_rows_max,
                                  vmem_tile_budget_bytes)


def _data_embedding_pallas(x, weight, bias, block_rows_max,
                           vmem_tile_budget_bytes):
    *lead, c_in = x.shape
    d_model = weight.shape[1]
    T = int(math.prod(lead)) if lead else 1
    xf = x.reshape(T, c_in)

    # Lane-dense output: pad weight/bias columns to a multiple of 128 so the
    # store path is unmasked full-width vst.  No-op for common d_model values.
    dp = _round_up(d_model, 128)
    if dp != d_model:
        weight = jnp.pad(weight, ((0, 0), (0, dp - d_model)))
        bias = jnp.pad(bias, (0, dp - d_model))
    bias2d = bias.reshape(1, dp)

    # Row-tile size from the real VMEM footprint:
    #   (x tile + y tile), lane-padded to 128, double-buffered.
    itemsize = jnp.dtype(x.dtype).itemsize
    bytes_per_row = 2 * itemsize * (_round_up(c_in, 128) + dp)
    rows_budget = max(8, (vmem_tile_budget_bytes // bytes_per_row) // 8 * 8)
    # Keep >= ~4 grid steps so writeback of tile i-1 overlaps the load of tile
    # i+1 and the "parallel" axis has work to shard across 2 TCs on v7x.
    rows_steps = max(8, _round_up(pl.cdiv(T, 4), 8))
    rows = min(block_rows_max, rows_budget, rows_steps)

    grid = (pl.cdiv(T, rows),)   # ragged last block handled by Pallas masking

    cost = pl.CostEstimate(
        flops=2 * T * c_in * dp,
        transcendentals=0,
        bytes_accessed=itemsize * (T * c_in + T * dp + c_in * dp + dp),
    )

    out = pl.pallas_call(
        _embed_kernel,
        out_shape=jax.ShapeDtypeStruct((T, dp), x.dtype),
        grid=grid,
        in_specs=[
            pl.BlockSpec((rows, c_in), lambda i: (i, 0)),   # token tile
            pl.BlockSpec((c_in, dp), lambda i: (0, 0)),     # resident weight
            pl.BlockSpec((1, dp), lambda i: (0, 0)),        # resident bias
        ],
        out_specs=pl.BlockSpec((rows, dp), lambda i: (i, 0)),
        compiler_params=pltpu.CompilerParams(
            dimension_semantics=("parallel",),
        ),
        cost_estimate=cost,
    )(xf, weight, bias2d)

    if dp != d_model:
        out = out[:, :d_model]   # only when d_model is not already lane-dense
    return out.reshape(*lead, d_model) if lead else out.reshape(d_model)


# ---------------------------------------------------------------------------
# Deterministic parameter init (matches nn.Linear default init bounds).
# ---------------------------------------------------------------------------
def init_params(key, c_in, d_model):
    bound = 1.0 / math.sqrt(c_in)
    kw, kb = jax.random.split(key)
    weight = jax.random.uniform(kw, (c_in, d_model), jnp.float32, -bound, bound)
    bias = jax.random.uniform(kb, (d_model,), jnp.float32, -bound, bound)
    return weight, bias


if __name__ == "__main__":
    key = jax.random.PRNGKey(0)

    # --- Test 1: small shape consistent with the module (B, L, c_in) --------
    B, L, c_in, d_model = 2, 16, 4, 32
    k1, k2, key = jax.random.split(key, 3)
    x = jax.random.normal(k1, (B, L, c_in), dtype=jnp.float32)
    weight, bias = init_params(k2, c_in, d_model)

    # Force the Pallas path (the default fast-path threshold would route this
    # tiny problem to plain JAX).
    y = data_embedding(x, weight, bias, min_pallas_elements=0)
    jax.block_until_ready(y)
    assert y.shape == (B, L, d_model)
    assert bool(jnp.all(jnp.isfinite(y)))
    y_ref = (x.reshape(-1, c_in) @ weight + bias).reshape(B, L, d_model)
    assert bool(jnp.allclose(y, y_ref, atol=1e-5, rtol=1e-5))

    # --- Test 2: ragged token count + already lane-dense d_model -------------
    B2, L2, c_in2, d_model2 = 2, 300, 7, 128
    k3, k4 = jax.random.split(key)
    x2 = jax.random.normal(k3, (B2, L2, c_in2), dtype=jnp.float32)
    w2, b2 = init_params(k4, c_in2, d_model2)

    y2 = data_embedding(x2, w2, b2, min_pallas_elements=0)
    jax.block_until_ready(y2)
    assert y2.shape == (B2, L2, d_model2)
    y2_ref = (x2.reshape(-1, c_in2) @ w2 + b2).reshape(B2, L2, d_model2)
    assert bool(jnp.allclose(y2, y2_ref, atol=1e-5, rtol=1e-5))

    print("KERNEL_OK")
</pallas_src>

<mosaic_0001>
module attributes {stable_mosaic.version = 11 : i64} {
  func.func @_embed_kernel(%arg0: i32, %arg1: memref<8x4xf32, #tpu.memory_space<vmem>>, %arg2: memref<4x128xf32, #tpu.memory_space<vmem>>, %arg3: memref<1x128xf32, #tpu.memory_space<vmem>>, %arg4: memref<8x128xf32, #tpu.memory_space<vmem>>) attributes {dimension_semantics = [#tpu.dimension_semantics<parallel>], iteration_bounds = array<i64: 4>, scalar_prefetch = 0 : i64, scratch_operands = 0 : i64, tpu.core_type = #tpu.core_type<tc>, window_params = [{transform_indices = @transform_0, window_bounds = array<i64: 8, 4>}, {pipeline_mode = #tpu.pipeline_mode<synchronous>, transform_indices = @transform_1, window_bounds = array<i64: 4, 128>}, {pipeline_mode = #tpu.pipeline_mode<synchronous>, transform_indices = @transform_2, window_bounds = array<i64: 1, 128>}, {transform_indices = @transform_3, window_bounds = array<i64: 8, 128>}]} {
    %c0 = arith.constant 0 : index
    %c0_0 = arith.constant 0 : index
    %0 = vector.load %arg1[%c0, %c0_0] : memref<8x4xf32, #tpu.memory_space<vmem>>, vector<8x4xf32>
    %c0_1 = arith.constant 0 : index
    %c0_2 = arith.constant 0 : index
    %1 = vector.load %arg2[%c0_1, %c0_2] : memref<4x128xf32, #tpu.memory_space<vmem>>, vector<4x128xf32>
    %cst = arith.constant dense<0.000000e+00> : vector<8x128xf32>
    %2 = tpu.matmul %0, %1, %cst {dimension_numbers = #tpu.dot_dimension_numbers<[1], [0], [0], [1], [0, 0, 1, 1], [], []>} : vector<8x4xf32>, vector<4x128xf32>, vector<8x128xf32> -> vector<8x128xf32>
    %c0_3 = arith.constant 0 : index
    %c0_4 = arith.constant 0 : index
    %3 = vector.load %arg3[%c0_3, %c0_4] : memref<1x128xf32, #tpu.memory_space<vmem>>, vector<1x128xf32>
    %4 = vector.broadcast %3 : vector<1x128xf32> to vector<8x128xf32>
    %5 = arith.addf %2, %4 : vector<8x128xf32>
    %c0_5 = arith.constant 0 : index
    %c0_6 = arith.constant 0 : index
    %6 = vector.load %arg4[%c0_5, %c0_6] : memref<8x128xf32, #tpu.memory_space<vmem>>, vector<8x128xf32>
    tpu.vector_store %arg4[%c0_5, %c0_6], %5 {strides = array<i32>} : memref<8x128xf32, #tpu.memory_space<vmem>>, vector<8x128xf32>,
    return
  }
  func.func @transform_0(%arg0: i32) -> (i32, i32) {
    %c0_i32 = arith.constant 0 : i32
    %c0_i32_0 = arith.constant 0 : i32
    return %arg0, %c0_i32 : i32, i32
  }
  func.func @transform_1(%arg0: i32) -> (i32, i32) {
    %c0_i32 = arith.constant 0 : i32
    %c0_i32_0 = arith.constant 0 : i32
    %c0_i32_1 = arith.constant 0 : i32
    return %c0_i32, %c0_i32_0 : i32, i32
  }
  func.func @transform_2(%arg0: i32) -> (i32, i32) {
    %c0_i32 = arith.constant 0 : i32
    %c0_i32_0 = arith.constant 0 : i32
    %c0_i32_1 = arith.constant 0 : i32
    return %c0_i32, %c0_i32_0 : i32, i32
  }
  func.func @transform_3(%arg0: i32) -> (i32, i32) {
    %c0_i32 = arith.constant 0 : i32
    %c0_i32_0 = arith.constant 0 : i32
    return %arg0, %c0_i32 : i32, i32
  }
}

</mosaic_0001>

<llo_original>
// kernel: tpu_custom_call.1
$region0: #{tpu_custom_call.1}
  #allocation0 [shape = 'u32[]', space=smem, size = 0x4, offset = 0x4, fixed_abs, tag = 'smem constant byte address 0x4 - core index']
  #allocation1 [shape = 'u32[144,128]{1,0:T(1,128)}', space=vmem, size = 0x12000, scoped, tag = 'internal scratch']
  %s0 = inlined_call_operand.vmem [shape: f32[32,4], index: 0, kind: input, shape index: {}]
  %s1 = inlined_call_operand.vmem [shape: f32[4,128], index: 1, kind: input, shape index: {}]
  %s2 = inlined_call_operand.vmem [shape: f32[1,128], index: 2, kind: input, shape index: {}]
  %s3 = inlined_call_operand.hbm [shape: f32[32,128], index: 3, kind: output, shape index: {}]
  %s4 = sld [smem:[#allocation0]]
  $region45: #{tpu_custom_call.1} parent=0
    _
  %s6 = ssub.s32 1, %s4
  %s7 = scalar_select 0, %s6, %s4
  $region1: #{tpu_custom_call.1} parent=0
    #allocation2 [shape = 'u8[8192]{0}', space=vmem, size = 0x2000, scoped, tag = 'output window, operand 0']
    #allocation3 [shape = 's32[2]{0}', space=sflag, size = 0x8, scoped, tag = 'scoped memory for tpu_custom_call.1']
    %8 = vsyncpa [#allocation3], 0
    %s9 = scalar_lea.sflag [#allocation3], 1
    %10 = vsyncpa %s9, 0
    loop: start=0, step=1, limit=6
    $region2: #{tpu_custom_call.1} parent=1 // loop_pre_header
      _
    $region3: #{tpu_custom_call.1} parent=1 // loop_header
      %s12 = sphi 0, %s16
      %p13 = scmp.ge.s32.totalorder %s12, 6
      %s22 = sphi 0, %s24
      %s25 = sphi 0, %s22
      %s26 = sphi 0, %s25
      %s42 = sphi 0, %s26
      %s46 = sphi 0, %s46
      %s48 = sphi 0, %s46
      %s49 = sphi 0, %s48
      %s63 = sphi 0, %s49
      %s67 = sphi 0, %s67
      %s69 = sphi 0, %s67
      %s70 = sphi 0, %s69
      %s84 = sphi 0, %s70
      %s90 = sphi 0, %s92
      %s93 = sphi 0, %s90
      %s94 = sphi 0, %s93
      %s110 = sphi 0, %s94
    $region4: #{tpu_custom_call.1} parent=1 // loop_header_branch
      %15 = sbr.rel (%p13) target = $region8
    $region5: #{tpu_custom_call.1} parent=1 // loop_body
      %s17 = ssub.s32 %s12, 1
      %s18 = ssub.s32 %s12, 2
      %s19 = sadd.s32 %s12, 1
      %s20 = ssub.s32 %s12, %s19
      %p21 = scmp.eq.s32.totalorder %s20, 0
      %s23 = sadd.s32 %s22, 1
      %s24 = scalar_select %p21, %s22, %s23
      %p27 = pneg %p21
      %p28 = scmp.eq.s32.totalorder %s12, 3
      %p29 = por %p27, %p28
      %p30 = scmp.ne.s32.totalorder %s22, %s25
      %p31 = scmp.eq.s32.totalorder %s12, 0
      %p32 = por %p30, %p31
      %p33 = scmp.ne.s32.totalorder %s22, %s25
      %p34 = scmp.eq.s32.totalorder %s17, 3
      %p35 = por %p33, %p34
      %p36 = scmp.ne.s32.totalorder %s25, %s26
      %p37 = scmp.eq.s32.totalorder %s17, 0
      %p38 = por %p36, %p37
      %p39 = scmp.ne.s32.totalorder %s25, %s26
      %p40 = scmp.eq.s32.totalorder %s18, 3
      %p41 = por %p39, %p40
      %p43 = scmp.ne.s32.totalorder %s26, %s42
      %p44 = scmp.eq.s32.totalorder %s18, 0
      %p45 = por %p43, %p44
      %s47 = sadd.s32 %s46, 1
      %p50 = scmp.eq.s32.totalorder %s12, 3
      %p51 = scmp.ne.s32.totalorder %s46, %s48
      %p52 = scmp.eq.s32.totalorder %s12, 0
      %p53 = por %p51, %p52
      %p54 = scmp.ne.s32.totalorder %s46, %s48
      %p55 = scmp.eq.s32.totalorder %s17, 3
      %p56 = por %p54, %p55
      %p57 = scmp.ne.s32.totalorder %s48, %s49
      %p58 = scmp.eq.s32.totalorder %s17, 0
      %p59 = por %p57, %p58
      %p60 = scmp.ne.s32.totalorder %s48, %s49
      %p61 = scmp.eq.s32.totalorder %s18, 3
      %p62 = por %p60, %p61
      %p64 = scmp.ne.s32.totalorder %s49, %s63
      %p65 = scmp.eq.s32.totalorder %s18, 0
      %p66 = por %p64, %p65
      %s68 = sadd.s32 %s67, 1
      %p71 = scmp.eq.s32.totalorder %s12, 3
      %p72 = scmp.ne.s32.totalorder %s67, %s69
      %p73 = scmp.eq.s32.totalorder %s12, 0
      %p74 = por %p72, %p73
      %p75 = scmp.ne.s32.totalorder %s67, %s69
      %p76 = scmp.eq.s32.totalorder %s17, 3
      %p77 = por %p75, %p76
      %p78 = scmp.ne.s32.totalorder %s69, %s70
      %p79 = scmp.eq.s32.totalorder %s17, 0
      %p80 = por %p78, %p79
      %p81 = scmp.ne.s32.totalorder %s69, %s70
      %p82 = scmp.eq.s32.totalorder %s18, 3
      %p83 = por %p81, %p82
      %p85 = scmp.ne.s32.totalorder %s70, %s84
      %p86 = scmp.eq.s32.totalorder %s18, 0
      %p87 = por %p85, %p86
      %s88 = ssub.s32 %s12, %s19
      %p89 = scmp.eq.s32.totalorder %s88, 0
      %s91 = sadd.s32 %s90, 1
      %s92 = scalar_select %p89, %s90, %s91
      %p95 = pneg %p89
      %p96 = scmp.eq.s32.totalorder %s12, 3
      %p97 = por %p95, %p96
      %p98 = scmp.ne.s32.totalorder %s90, %s93
      %p99 = scmp.eq.s32.totalorder %s12, 0
      %p100 = por %p98, %p99
      %p101 = scmp.ne.s32.totalorder %s90, %s93
      %p102 = scmp.eq.s32.totalorder %s17, 3
      %p103 = por %p101, %p102
      %p104 = scmp.ne.s32.totalorder %s93, %s94
      %p105 = scmp.eq.s32.totalorder %s17, 0
      %p106 = por %p104, %p105
      %p107 = scmp.ne.s32.totalorder %s93, %s94
      %p108 = scmp.eq.s32.totalorder %s18, 3
      %p109 = por %p107, %p108
      %p111 = scmp.ne.s32.totalorder %s94, %s110
      %p112 = scmp.eq.s32.totalorder %s18, 0
      %p113 = por %p111, %p112
      %p114 = scmp.le.s32.totalorder 1, %s12
      %p115 = scmp.lt.s32.totalorder %s12, 5
      %p116 = pnand %p114, %p115
      %p117 = pneg %p116
      // Predicated region
      $region9: #{tpu_custom_call.1} parent=5 // pred_check
        _
      $region10: #{tpu_custom_call.1} parent=5 // pred_check_branch
        %119 = sbr.rel (%p116) target = $region12
      $region11: #{tpu_custom_call.1} parent=5 // pred_region
        %s120 = ssub.s32 %s12, 1
        // Predicated region
        $region13: #{tpu_custom_call.1} parent=11 // pred_check
          %p121 = pneg %p59
        $region14: #{tpu_custom_call.1} parent=11 // pred_check_branch
          %123 = sbr.rel (%p121) target = $region16
        $region15: #{tpu_custom_call.1} parent=11 // pred_region
          _
        $region16: #{tpu_custom_call.1} parent=11 // pred_fallthru
          _
        // Predicated region
        $region17: #{tpu_custom_call.1} parent=11 // pred_check
          %p124 = pneg %p80
        $region18: #{tpu_custom_call.1} parent=11 // pred_check_branch
          %126 = sbr.rel (%p124) target = $region20
        $region19: #{tpu_custom_call.1} parent=11 // pred_region
          _
        $region20: #{tpu_custom_call.1} parent=11 // pred_fallthru
          _
      $region12: #{tpu_custom_call.1} parent=5 // pred_fallthru
        _
      %p127 = scmp.lt.s32.totalorder %s12, 4
      // Predicated region
      $region21: #{tpu_custom_call.1} parent=5 // pred_check
        %p128 = pneg %p127
      $region22: #{tpu_custom_call.1} parent=5 // pred_check_branch
        %130 = sbr.rel (%p128) target = $region24
      $region23: #{tpu_custom_call.1} parent=5 // pred_region
        // Predicated region
        $region25: #{tpu_custom_call.1} parent=23 // pred_check
          %p131 = pneg %p32
        $region26: #{tpu_custom_call.1} parent=23 // pred_check_branch
          %133 = sbr.rel (%p131) target = $region28
        $region27: #{tpu_custom_call.1} parent=23 // pred_region
          %p134 = scmp.lt.s32.totalorder %s12, 3
          %s135 = scalar_select %p134, %s12, 3
          %s136 = smul.addr %s135, 8
          %s137 = scalar_lea.vmem %s0, %s136
        $region28: #{tpu_custom_call.1} parent=23 // pred_fallthru
          _
      $region24: #{tpu_custom_call.1} parent=5 // pred_fallthru
        _
      %p138 = scmp.le.s32.totalorder 1, %s12
      %p139 = scmp.lt.s32.totalorder %s12, 5
      %p140 = pnand %p138, %p139
      %p141 = pneg %p140
      // Predicated region
      $region29: #{tpu_custom_call.1} parent=5 // pred_check
        _
      $region30: #{tpu_custom_call.1} parent=5 // pred_check_branch
        %143 = sbr.rel (%p140) target = $region32
      $region31: #{tpu_custom_call.1} parent=5 // pred_region
        %s144 = ssub.s32 %s12, 1
        %p145 = scmp.lt.s32.totalorder %s17, 3
        %s146 = scalar_select %p145, %s17, 3
        %s147 = smul.addr %s146, 8
        %s148 = scalar_lea.vmem %s0, %s147
        %p149 = pneg %p38
        %p150 = pneg %p35
        %p151 = pneg %p59
        %p152 = pneg %p56
        %p153 = pneg %p80
        %p154 = pneg %p77
        %p155 = pneg %p106
        %p156 = pneg %p103
        %s157 = sand.u32 %s93, 1
        %s158 = scalar_lea.sflag [#allocation3], %s157
        %s159 = sand.u32 %s93, 1
        %s160 = smul.addr %s159, 8
        %s161 = scalar_lea.vmem [#allocation2], %s160
        %p162 = scmp.lt.s32.totalorder %s17, 3
        %s163 = scalar_select %p162, %s17, 3
        %s164 = smul.addr %s163, 8
        %s165 = scalar_lea.vmem %s0, %s164
        %v166 = vld [vmem:[%s165] sm:$0xff]
        %v167 = vld [vmem:[%s1] sm:$0xf]
        %v168 = vld [vmem:[%s2] sm:$0x1]
        %v170 = vlaneseq
        %v171 = vshrl.u32 %v170, 7
        %v172 = vsub.s32 0, %v171
        %v173 = vrot.slane %v168, %v172
        %vm175 = vcmask 31744
        %v177 = vsel %vm175, %v166, 0
        %vm179 = vcmask 1043456
        %v181 = vsel %vm179, %v167, 0
        %183 = vmatprep.subr.mxu0 0.0
        %184 = vmatpush1.msra.mxu0 0.0
        %185 = vmatprep.subr.mxu0 0.0
        %186 = vmatpush1.msra.mxu0 0.0
        %187 = vmatprep.subr.mxu0 0.0
        %188 = vmatpush1.msra.mxu0 0.0
        %189 = vmatprep.subr.mxu0 0.0
        %190 = vmatpush1.msra.mxu0 0.0
        %191 = vmatprep.subr.mxu0 0.0
        %192 = vmatpush1.msra.mxu0 0.0
        %193 = vmatprep.subr.mxu0 0.0
        %194 = vmatpush1.msra.mxu0 0.0
        %195 = vmatprep.subr.mxu0 0.0
        %196 = vmatpush1.msra.mxu0 0.0
        %197 = vmatprep.subr.mxu0 0.0
        %198 = vmatpush1.msra.mxu0 0.0
        %199 = vmatprep.subr.mxu0 0.0
        %200 = vmatpush1.msra.mxu0 0.0
        %201 = vmatprep.subr.mxu0 0.0
        %202 = vmatpush1.msra.mxu0 0.0
        %203 = vmatprep.subr.mxu0 0.0
        %204 = vmatpush1.msra.mxu0 0.0
        %205 = vmatprep.subr.mxu0 0.0
        %206 = vmatpush1.msra.mxu0 0.0
        %207 = vmatprep.subr.mxu0 0.0
        %208 = vmatpush1.msra.mxu0 0.0
        %209 = vmatprep.subr.mxu0 0.0
        %210 = vmatpush1.msra.mxu0 0.0
        %211 = vmatprep.subr.mxu0 0.0
        %212 = vmatpush1.msra.mxu0 0.0
        %213 = vmatprep.subr.mxu0 0.0
        %214 = vmatpush1.msra.mxu0 %v181
        %215 = vmatprep.subr.mxu0 0.0
        %216 = vmatpush2.msra.mxu0 0.0
        %217 = vmatprep.subr.mxu0 0.0
        %218 = vmatpush2.msra.mxu0 0.0
        %219 = vmatprep.subr.mxu0 0.0
        %220 = vmatpush2.msra.mxu0 0.0
        %221 = vmatprep.subr.mxu0 0.0
        %222 = vmatpush2.msra.mxu0 0.0
        %223 = vmatprep.subr.mxu0 0.0
        %224 = vmatpush2.msra.mxu0 0.0
        %225 = vmatprep.subr.mxu0 0.0
        %226 = vmatpush2.msra.mxu0 0.0
        %227 = vmatprep.subr.mxu0 0.0
        %228 = vmatpush2.msra.mxu0 0.0
        %229 = vmatprep.subr.mxu0 0.0
        %230 = vmatpush2.msra.mxu0 0.0
        %231 = vmatprep.subr.mxu0 0.0
        %232 = vmatpush2.msra.mxu0 0.0
        %233 = vmatprep.subr.mxu0 0.0
        %234 = vmatpush2.msra.mxu0 0.0
        %235 = vmatprep.subr.mxu0 0.0
        %236 = vmatpush2.msra.mxu0 0.0
        %237 = vmatprep.subr.mxu0 0.0
        %238 = vmatpush2.msra.mxu0 0.0
        %239 = vmatprep.subr.mxu0 0.0
        %240 = vmatpush2.msra.mxu0 0.0
        %241 = vmatprep.subr.mxu0 0.0
        %242 = vmatpush2.msra.mxu0 0.0
        %243 = vmatprep.subr.mxu0 0.0
        %244 = vmatpush2.msra.mxu0 0.0
        %245 = vmatprep.subr.mxu0 0.0
        %246 = vmatpush2.msra.mxu0 0.0
        %247 = vmatprep.mubr.f32.mxu0 0.0
        %248 = vmatmul.mubr.f32.gmra.mxu0 %v177
        %v249 = vpop.f32.mrf.mxu0
        %v250 = vadd.f32 %v173, %v249
        %v251 = vpop.f32.mrf.mxu0
        %252 = vdwg.mxu0
        %253 = vst [vmem:[%s161] sm:$0xff] %v250
        %s254 = sand.u32 %s93, 1
        %s255 = scalar_lea.sflag [#allocation3], %s254
        %s256 = sand.u32 %s93, 1
        %s257 = smul.addr %s256, 8
        %s258 = scalar_lea.vmem [#allocation2], %s257
        // Predicated region
        $region33: #{tpu_custom_call.1} parent=31 // pred_check
          %p259 = pneg %p103
        $region34: #{tpu_custom_call.1} parent=31 // pred_check_branch
          %261 = sbr.rel (%p259) target = $region36
        $region35: #{tpu_custom_call.1} parent=31 // pred_region
          %s263 = ssub.s32 128, 128
          %264 = vsyncadd %s255, %s263
          %s265 = smul.addr %s17, 128
          %s266 = scalar_lea.hbm %s3, %s265
          %s268 = sshll.u32 %s258, 4
          %s269 = int_to_ptr.vmem [resolvable:$true] %s268
          %271 = dma.vmem_to_hbm [thread:$0]  %s269, 128, %s266, %s255
        $region36: #{tpu_custom_call.1} parent=31 // pred_fallthru
          _
      $region32: #{tpu_custom_call.1} parent=5 // pred_fallthru
        _
      %p272 = scmp.le.s32.totalorder 2, %s12
      // Predicated region
      $region37: #{tpu_custom_call.1} parent=5 // pred_check
        %p273 = pneg %p272
      $region38: #{tpu_custom_call.1} parent=5 // pred_check_branch
        %275 = sbr.rel (%p273) target = $region40
      $region39: #{tpu_custom_call.1} parent=5 // pred_region
        %s276 = ssub.s32 %s12, 2
        // Predicated region
        $region41: #{tpu_custom_call.1} parent=39 // pred_check
          %p277 = pneg %p109
        $region42: #{tpu_custom_call.1} parent=39 // pred_check_branch
          %279 = sbr.rel (%p277) target = $region44
        $region43: #{tpu_custom_call.1} parent=39 // pred_region
          %s280 = sand.u32 %s94, 1
          %s281 = scalar_lea.sflag [#allocation3], %s280
          %s282 = sand.u32 %s94, 1
          %s283 = smul.addr %s282, 8
          %s284 = scalar_lea.vmem [#allocation2], %s283
          %285 = dma.done %s281, 128
        $region44: #{tpu_custom_call.1} parent=39 // pred_fallthru
          _
      $region40: #{tpu_custom_call.1} parent=5 // pred_fallthru
        _
    $region6: #{tpu_custom_call.1} parent=1 // loop_footer
      %s16 = sadd.s32 1, %s12
    $region7: #{tpu_custom_call.1} parent=1 // loop_footer_branch
      %11 = sbr.rel target = $region3
    $region8: #{tpu_custom_call.1} parent=1 // loop_exit
      _
    %286 = vsyncpa [#allocation3], 1
    %s287 = scalar_lea.sflag [#allocation3], 1
    %288 = vsyncpa %s287, 1

</llo_original>
